<compile_context>
chip_gen: v7x
topology: tpu7x:2x2x1
jax: 0.10.0
libtpu: 0.0.40
codegen_flags: <defaults>
</compile_context>

<pallas_src>
import math

import jax
import jax.numpy as jnp
from jax.experimental import pallas as pl
from jax.experimental.pallas import tpu as pltpu


def moe_kernel(x_ref, wg_ref, bg_ref, w1_ref, b1_ref, w2_ref, b2_ref, o_ref,
               acc_ref, probs_ref, xc_ref, we_ref):
    """One (token-tile, expert, d_ff-chunk) step of the dense MoE forward.

    x_ref : (TN, D)        token tile (f32)
    wg_ref: (D, E)         gate weight
    bg_ref: (1, E)         gate bias
    w1_ref: (1, D, TF)     current expert's up-proj weight chunk (compute dtype)
    b1_ref: (1, 1, TF)     current expert's up-proj bias chunk (f32)
    w2_ref: (1, TF, D)     current expert's down-proj weight chunk
    b2_ref: (1, 1, D)      current expert's down-proj bias
    o_ref : (TN, D)        output tile (written on the last (e, f) step)
    acc_ref  : (TN, D) f32 VMEM accumulator
    probs_ref: (TN, E) f32 cached gate probabilities
    xc_ref   : (TN, D)     compute-dtype copy of the token tile (cast once)
    we_ref   : (TN, 1) f32 current expert's gate weight (computed once / expert)
    """
    e = pl.program_id(1)
    f = pl.program_id(2)
    last_e = pl.num_programs(1) - 1
    last_f = pl.num_programs(2) - 1

    # ---- once per token tile: gate softmax, acc init, compute-dtype x ------
    @pl.when(jnp.logical_and(e == 0, f == 0))
    def _():
        x = x_ref[...]
        xc_ref[...] = x.astype(xc_ref.dtype)
        logits = jnp.dot(x, wg_ref[...],
                         preferred_element_type=jnp.float32) + bg_ref[...]
        m = jnp.max(logits, axis=-1, keepdims=True)
        p = jnp.exp(logits - m)
        denom = jnp.sum(p, axis=-1, keepdims=True)
        probs_ref[...] = p * pl.reciprocal(denom, approx=True)   # EUP slot
        acc_ref[...] = jnp.zeros_like(acc_ref)

    # ---- once per expert: gate column (masked lane-reduce) + output bias ---
    @pl.when(f == 0)
    def _():
        probs = probs_ref[...]
        lane = jax.lax.broadcasted_iota(jnp.int32, probs.shape, 1)
        we_ref[...] = jnp.sum(jnp.where(lane == e, probs, 0.0),
                              axis=-1, keepdims=True)
        # Expert output bias added exactly once per expert, pre-scaled.
        acc_ref[...] += we_ref[...] * b2_ref[0]

    # ---- expert FFN on this F-chunk -----------------------------------------
    w_e = we_ref[...]
    h = jnp.dot(xc_ref[...], w1_ref[0],
                preferred_element_type=jnp.float32) + b1_ref[0]
    h = jnp.maximum(h, 0.0)                                # ReLU, (TN, TF) f32
    # Fold the gate weight into h (a (TN, TF) mul) instead of scaling y.
    hw = (w_e * h).astype(w2_ref.dtype)
    acc_ref[...] += jnp.dot(hw, w2_ref[0],
                            preferred_element_type=jnp.float32)

    @pl.when(jnp.logical_and(e == last_e, f == last_f))
    def _():
        o_ref[...] = acc_ref[...].astype(o_ref.dtype)


# ---------------------------- tiling heuristics -----------------------------
def _round_up(a, b):
    return (a + b - 1) // b * b


def _vmem_capacity_bytes():
    try:
        info = pltpu.get_tpu_info()
        cap = getattr(info, "vmem_capacity_bytes", None)
        if cap:
            return int(cap)
    except Exception:
        pass
    try:
        kind = jax.devices()[0].device_kind.lower()
    except Exception:
        kind = ""
    return (64 << 20) if "v7" in kind else (128 << 20)


def _choose_token_tile(N, token_tile):
    tn = min(token_tile, _round_up(N, 8))
    if tn >= 256:
        tn = (tn // 256) * 256          # full-height tiles for the 256-row MXU
    n_pad = _round_up(N, tn)
    # v7x megacore: make sure both TensorCores get a token tile when possible.
    if n_pad // tn < 2 and N > 256:
        tn = max(256, _round_up((N + 1) // 2, 256))
        n_pad = _round_up(N, tn)
    return tn, n_pad


def _choose_ff_tile(F, D, w_item, cap):
    """Largest d_ff chunk whose double-buffered W1+W2 blocks fit the budget."""
    budget = int(0.45 * cap)            # weight chunks <= ~45% of VMEM
    tf_max = max(budget // (4 * D * w_item), 128)
    if F <= tf_max:
        return F                        # whole d_ff fits (also covers F < 128)
    t = (min(tf_max, F) // 128) * 128
    while t >= 128:
        if F % t == 0:
            return t                    # largest multiple-of-128 divisor of F
        t -= 128
    # TODO(synk): pad d_ff to a multiple of 128 instead of keeping it resident.
    return F


def moe_forward(x, wg, bg, w1, b1, w2, b2, *, token_tile=512,
                weight_dtype=jnp.bfloat16):
    """x: (B, S, D) float32 -> (B, S, D) float32.

    weight_dtype: dtype for W1/W2 and the cached x/h matmul operands.  bf16
    (default) halves the dominant weight HBM traffic and runs the MXU at
    native rate; accumulation, gate and biases stay f32.  Pass None for f32.
    """
    B, S, D = x.shape
    E = wg.shape[1]
    F = w1.shape[2]
    N = B * S

    if weight_dtype is not None:
        w1 = w1.astype(weight_dtype)
        w2 = w2.astype(weight_dtype)
    w_item = jnp.dtype(w1.dtype).itemsize

    cap = _vmem_capacity_bytes()
    tn, n_pad = _choose_token_tile(N, token_tile)

    def fixed_bytes(tn_):
        # Double-buffered x/gate/out blocks + (acc, probs, x-cast, w_e) scratch.
        return (2 * (tn_ * D * 4 + D * E * 4 + E * 4 + tn_ * D * 4)
                + tn_ * D * 4 + tn_ * E * 4 + tn_ * D * w_item + tn_ * 4)

    while tn > 8 and fixed_bytes(tn) > int(0.30 * cap):
        tn = max(8, _round_up(tn // 2, 8))
        n_pad = _round_up(N, tn)

    tf = _choose_ff_tile(F, D, w_item, cap)
    weight_bytes = 2 * (D * tf * w_item + tf * 4 + tf * D * w_item + D * 4)
    est = fixed_bytes(tn) + weight_bytes
    vmem_limit = int(min(max(int(1.3 * est), 32 << 20), 100 << 20,
                         int(0.9 * cap)))

    x2d = x.reshape(N, D)
    if n_pad != N:
        x2d = jnp.pad(x2d, ((0, n_pad - N), (0, 0)))

    bg2 = bg.reshape(1, E)
    b1_3 = b1.reshape(E, 1, F)
    b2_3 = b2.reshape(E, 1, D)

    grid = (n_pad // tn, E, F // tf)

    out = pl.pallas_call(
        moe_kernel,
        out_shape=jax.ShapeDtypeStruct((n_pad, D), x.dtype),
        grid_spec=pltpu.PrefetchScalarGridSpec(
            num_scalar_prefetch=0,
            grid=grid,
            in_specs=[
                pl.BlockSpec((tn, D), lambda i, e, f: (i, 0)),        # x
                pl.BlockSpec((D, E), lambda i, e, f: (0, 0)),         # gate W
                pl.BlockSpec((1, E), lambda i, e, f: (0, 0)),         # gate b
                pl.BlockSpec((1, D, tf), lambda i, e, f: (e, 0, f)),  # W1 chunk
                pl.BlockSpec((1, 1, tf), lambda i, e, f: (e, 0, f)),  # b1 chunk
                pl.BlockSpec((1, tf, D), lambda i, e, f: (e, f, 0)),  # W2 chunk
                pl.BlockSpec((1, 1, D), lambda i, e, f: (e, 0, 0)),   # b2
            ],
            out_specs=pl.BlockSpec((tn, D), lambda i, e, f: (i, 0)),
            scratch_shapes=[
                pltpu.VMEM((tn, D), jnp.float32),    # f32 accumulator
                pltpu.VMEM((tn, E), jnp.float32),    # cached gate probs
                pltpu.VMEM((tn, D), w1.dtype),       # compute-dtype x copy
                pltpu.VMEM((tn, 1), jnp.float32),    # current expert gate col
            ],
        ),
        compiler_params=pltpu.CompilerParams(
            dimension_semantics=("parallel", "arbitrary", "arbitrary"),
            vmem_limit_bytes=vmem_limit,
        ),
    )(x2d, wg, bg2, w1, b1_3, w2, b2_3)

    return out[:N].reshape(B, S, D)


# ---------------- deterministic parameter init (mirrors init_linear) --------
def xavier_uniform(key, fan_in, fan_out, shape):
    bound = math.sqrt(6.0 / (fan_in + fan_out))
    return jax.random.uniform(key, shape, jnp.float32, -bound, bound)


def kaiming_uniform_relu(key, fan_in, shape):
    bound = math.sqrt(6.0 / fan_in)  # gain=sqrt(2), bound = gain*sqrt(3/fan_in)
    return jax.random.uniform(key, shape, jnp.float32, -bound, bound)


def init_moe_params(key, d_model, d_ff, num_experts):
    keys = jax.random.split(key, 2 * num_experts + 1)
    w1 = jnp.stack([
        kaiming_uniform_relu(keys[2 * e], d_model, (d_model, d_ff))
        for e in range(num_experts)
    ])                                                    # (E, D, F)
    w2 = jnp.stack([
        xavier_uniform(keys[2 * e + 1], d_ff, d_model, (d_ff, d_model))
        for e in range(num_experts)
    ])                                                    # (E, F, D)
    b1 = jnp.zeros((num_experts, d_ff), jnp.float32)
    b2 = jnp.zeros((num_experts, d_model), jnp.float32)
    wg = xavier_uniform(keys[-1], d_model, num_experts, (d_model, num_experts))
    bg = jnp.zeros((num_experts,), jnp.float32)
    return wg, bg, w1, b1, w2, b2


def moe_ref(x, wg, bg, w1, b1, w2, b2):
    """Pure-JAX reference mirroring the PyTorch forward."""
    gate_logits = x @ wg + bg                              # (B, S, E)
    gate_probs = jax.nn.softmax(gate_logits, axis=-1)
    h = jnp.maximum(jnp.einsum('bsd,edf->bsef', x, w1) + b1[None, None], 0.0)
    y = jnp.einsum('bsef,efd->bsed', h, w2) + b2[None, None]
    return jnp.sum(gate_probs[..., None] * y, axis=2)


if __name__ == "__main__":
    B, S, d_model, d_ff, num_experts = 2, 8, 32, 64, 4

    key = jax.random.PRNGKey(0)
    kx, kp = jax.random.split(key)
    x = jax.random.normal(kx, (B, S, d_model), jnp.float32)
    wg, bg, w1, b1, w2, b2 = init_moe_params(kp, d_model, d_ff, num_experts)

    ref = moe_ref(x, wg, bg, w1, b1, w2, b2)

    # f32-weight path: tight correctness check (only the approx reciprocal in
    # the gate softmax differs from the pure-JAX reference).
    out_f32 = jax.block_until_ready(
        moe_forward(x, wg, bg, w1, b1, w2, b2, weight_dtype=None))
    assert out_f32.shape == (B, S, d_model)
    assert jnp.allclose(out_f32, ref, atol=3e-3, rtol=3e-3), "f32 path mismatch"

    # Default bf16-weight path (MXU/HBM-optimized): looser tolerance for bf16.
    out_bf16 = jax.block_until_ready(moe_forward(x, wg, bg, w1, b1, w2, b2))
    assert out_bf16.shape == (B, S, d_model)
    assert jnp.allclose(out_bf16, ref, atol=5e-2, rtol=5e-2), "bf16 path mismatch"

    print("KERNEL_OK")
</pallas_src>

<mosaic_0001>
module attributes {stable_mosaic.version = 11 : i64} {
  func.func @moe_kernel(%arg0: i32, %arg1: i32, %arg2: i32, %arg3: memref<16x32xf32, #tpu.memory_space<vmem>>, %arg4: memref<32x4xf32, #tpu.memory_space<vmem>>, %arg5: memref<1x4xf32, #tpu.memory_space<vmem>>, %arg6: memref<1x32x64xf32, #tpu.memory_space<vmem>>, %arg7: memref<1x1x64xf32, #tpu.memory_space<vmem>>, %arg8: memref<1x64x32xf32, #tpu.memory_space<vmem>>, %arg9: memref<1x1x32xf32, #tpu.memory_space<vmem>>, %arg10: memref<16x32xf32, #tpu.memory_space<vmem>>, %arg11: memref<16x32xf32, #tpu.memory_space<vmem>>, %arg12: memref<16x4xf32, #tpu.memory_space<vmem>>, %arg13: memref<16x32xf32, #tpu.memory_space<vmem>>, %arg14: memref<16x1xf32, #tpu.memory_space<vmem>>) attributes {dimension_semantics = [#tpu.dimension_semantics<parallel>, #tpu.dimension_semantics<arbitrary>, #tpu.dimension_semantics<arbitrary>], iteration_bounds = array<i64: 1, 4, 1>, scalar_prefetch = 0 : i64, scratch_operands = 4 : i64, tpu.core_type = #tpu.core_type<tc>, window_params = [{transform_indices = @transform_0, window_bounds = array<i64: 16, 32>}, {pipeline_mode = #tpu.pipeline_mode<synchronous>, transform_indices = @transform_1, window_bounds = array<i64: 32, 4>}, {pipeline_mode = #tpu.pipeline_mode<synchronous>, transform_indices = @transform_2, window_bounds = array<i64: 1, 4>}, {transform_indices = @transform_3, window_bounds = array<i64: 1, 32, 64>}, {transform_indices = @transform_4, window_bounds = array<i64: 1, 1, 64>}, {transform_indices = @transform_5, window_bounds = array<i64: 1, 64, 32>}, {transform_indices = @transform_6, window_bounds = array<i64: 1, 1, 32>}, {transform_indices = @transform_7, window_bounds = array<i64: 16, 32>}]} {
    %c0_i32 = arith.constant 0 : i32
    %0 = arith.cmpi eq, %arg1, %c0_i32 : i32
    %c0_i32_0 = arith.constant 0 : i32
    %1 = arith.cmpi eq, %arg2, %c0_i32_0 : i32
    %2 = arith.andi %0, %1 : i1
    %3 = arith.extui %2 : i1 to i32
    %c0_i32_1 = arith.constant 0 : i32
    %4 = arith.cmpi ne, %3, %c0_i32_1 : i32
    scf.if %4 {
      %c0_24 = arith.constant 0 : index
      %c0_25 = arith.constant 0 : index
      %32 = vector.load %arg3[%c0_24, %c0_25] : memref<16x32xf32, #tpu.memory_space<vmem>>, vector<16x32xf32>
      %c0_26 = arith.constant 0 : index
      %c0_27 = arith.constant 0 : index
      %33 = vector.load %arg13[%c0_26, %c0_27] : memref<16x32xf32, #tpu.memory_space<vmem>>, vector<16x32xf32>
      tpu.vector_store %arg13[%c0_26, %c0_27], %32 {strides = array<i32>} : memref<16x32xf32, #tpu.memory_space<vmem>>, vector<16x32xf32>,
      %c0_28 = arith.constant 0 : index
      %c0_29 = arith.constant 0 : index
      %34 = vector.load %arg4[%c0_28, %c0_29] : memref<32x4xf32, #tpu.memory_space<vmem>>, vector<32x4xf32>
      %cst_30 = arith.constant dense<0.000000e+00> : vector<16x4xf32>
      %35 = tpu.matmul %32, %34, %cst_30 {dimension_numbers = #tpu.dot_dimension_numbers<[1], [0], [0], [1], [0, 0, 1, 1], [], []>} : vector<16x32xf32>, vector<32x4xf32>, vector<16x4xf32> -> vector<16x4xf32>
      %c0_31 = arith.constant 0 : index
      %c0_32 = arith.constant 0 : index
      %36 = vector.load %arg5[%c0_31, %c0_32] : memref<1x4xf32, #tpu.memory_space<vmem>>, vector<1x4xf32>
      %37 = vector.broadcast %36 : vector<1x4xf32> to vector<16x4xf32>
      %38 = arith.addf %35, %37 : vector<16x4xf32>
      %cst_33 = arith.constant dense<0xFF800000> : vector<16xf32>
      %39 = vector.multi_reduction <maximumf>, %38, %cst_33 [1] : vector<16x4xf32> to vector<16xf32>
      %40 = vector.shape_cast %39 : vector<16xf32> to vector<16x1xf32>
      %41 = vector.broadcast %40 : vector<16x1xf32> to vector<16x4xf32>
      %42 = arith.subf %38, %41 : vector<16x4xf32>
      %43 = math.exp %42 : vector<16x4xf32>
      %cst_34 = arith.constant dense<0.000000e+00> : vector<16xf32>
      %44 = vector.multi_reduction <add>, %43, %cst_34 [1] : vector<16x4xf32> to vector<16xf32>
      %45 = vector.shape_cast %44 : vector<16xf32> to vector<16x1xf32>
      %46 = tpu.reciprocal %45 {approx = true} : vector<16x1xf32> -> vector<16x1xf32>
      %47 = vector.broadcast %46 : vector<16x1xf32> to vector<16x4xf32>
      %48 = arith.mulf %43, %47 : vector<16x4xf32>
      %c0_35 = arith.constant 0 : index
      %c0_36 = arith.constant 0 : index
      %49 = vector.load %arg12[%c0_35, %c0_36] : memref<16x4xf32, #tpu.memory_space<vmem>>, vector<16x4xf32>
      tpu.vector_store %arg12[%c0_35, %c0_36], %48 {strides = array<i32>} : memref<16x4xf32, #tpu.memory_space<vmem>>, vector<16x4xf32>,
      %cst_37 = arith.constant 0.000000e+00 : f32
      %50 = vector.broadcast %cst_37 : f32 to vector<16x32xf32>
      %c0_38 = arith.constant 0 : index
      %c0_39 = arith.constant 0 : index
      %51 = vector.load %arg11[%c0_38, %c0_39] : memref<16x32xf32, #tpu.memory_space<vmem>>, vector<16x32xf32>
      tpu.vector_store %arg11[%c0_38, %c0_39], %50 {strides = array<i32>} : memref<16x32xf32, #tpu.memory_space<vmem>>, vector<16x32xf32>,
    } else {
    }
    %c0_i32_2 = arith.constant 0 : i32
    %5 = arith.cmpi eq, %arg2, %c0_i32_2 : i32
    %6 = arith.extui %5 : i1 to i32
    %c0_i32_3 = arith.constant 0 : i32
    %7 = arith.cmpi ne, %6, %c0_i32_3 : i32
    scf.if %7 {
      %c0_24 = arith.constant 0 : index
      %c0_25 = arith.constant 0 : index
      %32 = vector.load %arg12[%c0_24, %c0_25] : memref<16x4xf32, #tpu.memory_space<vmem>>, vector<16x4xf32>
      %33 = tpu.iota {dimensions = array<i32: 1>} : vector<16x4xi32>
      %34 = vector.broadcast %arg1 : i32 to vector<16x4xi32>
      %35 = arith.cmpi eq, %33, %34 : vector<16x4xi32>
      %cst_26 = arith.constant 0.000000e+00 : f32
      %36 = vector.broadcast %cst_26 : f32 to vector<16x4xf32>
      %37 = arith.select %35, %32, %36 : vector<16x4xi1>, vector<16x4xf32>
      %cst_27 = arith.constant dense<0.000000e+00> : vector<16xf32>
      %38 = vector.multi_reduction <add>, %37, %cst_27 [1] : vector<16x4xf32> to vector<16xf32>
      %39 = vector.shape_cast %38 : vector<16xf32> to vector<16x1xf32>
      %c0_28 = arith.constant 0 : index
      %c0_29 = arith.constant 0 : index
      %40 = vector.load %arg14[%c0_28, %c0_29] : memref<16x1xf32, #tpu.memory_space<vmem>>, vector<16x1xf32>
      tpu.vector_store %arg14[%c0_28, %c0_29], %39 {strides = array<i32>} : memref<16x1xf32, #tpu.memory_space<vmem>>, vector<16x1xf32>,
      %c0_30 = arith.constant 0 : index
      %c0_31 = arith.constant 0 : index
      %41 = vector.load %arg11[%c0_30, %c0_31] : memref<16x32xf32, #tpu.memory_space<vmem>>, vector<16x32xf32>
      %c0_32 = arith.constant 0 : index
      %c0_33 = arith.constant 0 : index
      %42 = vector.load %arg14[%c0_32, %c0_33] : memref<16x1xf32, #tpu.memory_space<vmem>>, vector<16x1xf32>
      %c0_34 = arith.constant 0 : index
      %c0_35 = arith.constant 0 : index
      %c0_36 = arith.constant 0 : index
      %43 = vector.load %arg9[%c0_34, %c0_35, %c0_36] : memref<1x1x32xf32, #tpu.memory_space<vmem>>, vector<1x1x32xf32>
      %44 = vector.shape_cast %43 : vector<1x1x32xf32> to vector<1x32xf32>
      %45 = vector.broadcast %42 : vector<16x1xf32> to vector<16x32xf32>
      %46 = vector.broadcast %44 : vector<1x32xf32> to vector<16x32xf32>
      %47 = arith.mulf %45, %46 : vector<16x32xf32>
      %48 = arith.addf %41, %47 : vector<16x32xf32>
      %c0_37 = arith.constant 0 : index
      %c0_38 = arith.constant 0 : index
      %49 = vector.load %arg11[%c0_37, %c0_38] : memref<16x32xf32, #tpu.memory_space<vmem>>, vector<16x32xf32>
      tpu.vector_store %arg11[%c0_37, %c0_38], %48 {strides = array<i32>} : memref<16x32xf32, #tpu.memory_space<vmem>>, vector<16x32xf32>,
    } else {
    }
    %c0 = arith.constant 0 : index
    %c0_4 = arith.constant 0 : index
    %8 = vector.load %arg14[%c0, %c0_4] : memref<16x1xf32, #tpu.memory_space<vmem>>, vector<16x1xf32>
    %c0_5 = arith.constant 0 : index
    %c0_6 = arith.constant 0 : index
    %9 = vector.load %arg13[%c0_5, %c0_6] : memref<16x32xf32, #tpu.memory_space<vmem>>, vector<16x32xf32>
    %c0_7 = arith.constant 0 : index
    %c0_8 = arith.constant 0 : index
    %c0_9 = arith.constant 0 : index
    %10 = vector.load %arg6[%c0_7, %c0_8, %c0_9] : memref<1x32x64xf32, #tpu.memory_space<vmem>>, vector<1x32x64xf32>
    %11 = vector.shape_cast %10 : vector<1x32x64xf32> to vector<32x64xf32>
    %cst = arith.constant dense<0.000000e+00> : vector<16x64xf32>
    %12 = tpu.matmul %9, %11, %cst {dimension_numbers = #tpu.dot_dimension_numbers<[1], [0], [0], [1], [0, 0, 1, 1], [], []>} : vector<16x32xf32>, vector<32x64xf32>, vector<16x64xf32> -> vector<16x64xf32>
    %c0_10 = arith.constant 0 : index
    %c0_11 = arith.constant 0 : index
    %c0_12 = arith.constant 0 : index
    %13 = vector.load %arg7[%c0_10, %c0_11, %c0_12] : memref<1x1x64xf32, #tpu.memory_space<vmem>>, vector<1x1x64xf32>
    %14 = vector.shape_cast %13 : vector<1x1x64xf32> to vector<1x64xf32>
    %15 = vector.broadcast %14 : vector<1x64xf32> to vector<16x64xf32>
    %16 = arith.addf %12, %15 : vector<16x64xf32>
    %cst_13 = arith.constant 0.000000e+00 : f32
    %17 = vector.broadcast %cst_13 : f32 to vector<16x64xf32>
    %18 = arith.maximumf %16, %17 : vector<16x64xf32>
    %19 = vector.broadcast %8 : vector<16x1xf32> to vector<16x64xf32>
    %20 = arith.mulf %19, %18 : vector<16x64xf32>
    %c0_14 = arith.constant 0 : index
    %c0_15 = arith.constant 0 : index
    %21 = vector.load %arg11[%c0_14, %c0_15] : memref<16x32xf32, #tpu.memory_space<vmem>>, vector<16x32xf32>
    %c0_16 = arith.constant 0 : index
    %c0_17 = arith.constant 0 : index
    %c0_18 = arith.constant 0 : index
    %22 = vector.load %arg8[%c0_16, %c0_17, %c0_18] : memref<1x64x32xf32, #tpu.memory_space<vmem>>, vector<1x64x32xf32>
    %23 = vector.shape_cast %22 : vector<1x64x32xf32> to vector<64x32xf32>
    %cst_19 = arith.constant dense<0.000000e+00> : vector<16x32xf32>
    %24 = tpu.matmul %20, %23, %cst_19 {dimension_numbers = #tpu.dot_dimension_numbers<[1], [0], [0], [1], [0, 0, 1, 1], [], []>} : vector<16x64xf32>, vector<64x32xf32>, vector<16x32xf32> -> vector<16x32xf32>
    %25 = arith.addf %21, %24 : vector<16x32xf32>
    %c0_20 = arith.constant 0 : index
    %c0_21 = arith.constant 0 : index
    %26 = vector.load %arg11[%c0_20, %c0_21] : memref<16x32xf32, #tpu.memory_space<vmem>>, vector<16x32xf32>
    tpu.vector_store %arg11[%c0_20, %c0_21], %25 {strides = array<i32>} : memref<16x32xf32, #tpu.memory_space<vmem>>, vector<16x32xf32>,
    %c3_i32 = arith.constant 3 : i32
    %27 = arith.cmpi eq, %arg1, %c3_i32 : i32
    %c0_i32_22 = arith.constant 0 : i32
    %28 = arith.cmpi eq, %arg2, %c0_i32_22 : i32
    %29 = arith.andi %27, %28 : i1
    %30 = arith.extui %29 : i1 to i32
    %c0_i32_23 = arith.constant 0 : i32
    %31 = arith.cmpi ne, %30, %c0_i32_23 : i32
    scf.if %31 {
      %c0_24 = arith.constant 0 : index
      %c0_25 = arith.constant 0 : index
      %32 = vector.load %arg11[%c0_24, %c0_25] : memref<16x32xf32, #tpu.memory_space<vmem>>, vector<16x32xf32>
      %c0_26 = arith.constant 0 : index
      %c0_27 = arith.constant 0 : index
      %33 = vector.load %arg10[%c0_26, %c0_27] : memref<16x32xf32, #tpu.memory_space<vmem>>, vector<16x32xf32>
      tpu.vector_store %arg10[%c0_26, %c0_27], %32 {strides = array<i32>} : memref<16x32xf32, #tpu.memory_space<vmem>>, vector<16x32xf32>,
    } else {
    }
    return
  }
  func.func @transform_0(%arg0: i32, %arg1: i32, %arg2: i32) -> (i32, i32) {
    %c0_i32 = arith.constant 0 : i32
    %c0_i32_0 = arith.constant 0 : i32
    return %arg0, %c0_i32 : i32, i32
  }
  func.func @transform_1(%arg0: i32, %arg1: i32, %arg2: i32) -> (i32, i32) {
    %c0_i32 = arith.constant 0 : i32
    %c0_i32_0 = arith.constant 0 : i32
    %c0_i32_1 = arith.constant 0 : i32
    return %c0_i32, %c0_i32_0 : i32, i32
  }
  func.func @transform_2(%arg0: i32, %arg1: i32, %arg2: i32) -> (i32, i32) {
    %c0_i32 = arith.constant 0 : i32
    %c0_i32_0 = arith.constant 0 : i32
    %c0_i32_1 = arith.constant 0 : i32
    return %c0_i32, %c0_i32_0 : i32, i32
  }
  func.func @transform_3(%arg0: i32, %arg1: i32, %arg2: i32) -> (i32, i32, i32) {
    %c0_i32 = arith.constant 0 : i32
    %c0_i32_0 = arith.constant 0 : i32
    return %arg1, %c0_i32, %arg2 : i32, i32, i32
  }
  func.func @transform_4(%arg0: i32, %arg1: i32, %arg2: i32) -> (i32, i32, i32) {
    %c0_i32 = arith.constant 0 : i32
    %c0_i32_0 = arith.constant 0 : i32
    return %arg1, %c0_i32, %arg2 : i32, i32, i32
  }
  func.func @transform_5(%arg0: i32, %arg1: i32, %arg2: i32) -> (i32, i32, i32) {
    %c0_i32 = arith.constant 0 : i32
    %c0_i32_0 = arith.constant 0 : i32
    return %arg1, %arg2, %c0_i32 : i32, i32, i32
  }
  func.func @transform_6(%arg0: i32, %arg1: i32, %arg2: i32) -> (i32, i32, i32) {
    %c0_i32 = arith.constant 0 : i32
    %c0_i32_0 = arith.constant 0 : i32
    %c0_i32_1 = arith.constant 0 : i32
    return %arg1, %c0_i32, %c0_i32_0 : i32, i32, i32
  }
  func.func @transform_7(%arg0: i32, %arg1: i32, %arg2: i32) -> (i32, i32) {
    %c0_i32 = arith.constant 0 : i32
    %c0_i32_0 = arith.constant 0 : i32
    return %arg0, %c0_i32 : i32, i32
  }
}

</mosaic_0001>

<llo_original>
// kernel: tpu_custom_call.1
$region0: #{tpu_custom_call.1}
  #allocation0 [shape = 'u32[]', space=smem, size = 0x4, offset = 0x4, fixed_abs, tag = 'smem constant byte address 0x4 - core index']
  #allocation1 [shape = 'u32[144,128]{1,0:T(1,128)}', space=vmem, size = 0x12000, scoped, tag = 'internal scratch']
  #allocation2 [shape = 'f32[16,32]{1,0:T(8,128)}', space=vmem, size = 0x2000, scoped, tag = 'scratch operand']
  #allocation3 [shape = 'f32[16,4]{1,0:T(8,128)}', space=vmem, size = 0x2000, scoped, tag = 'scratch operand']
  #allocation4 [shape = 'f32[16,32]{1,0:T(8,128)}', space=vmem, size = 0x2000, scoped, tag = 'scratch operand']
  #allocation5 [shape = 'f32[16,1]{1,0:T(8,128)}', space=vmem, size = 0x2000, scoped, tag = 'scratch operand']
  %s0 = inlined_call_operand.vmem [shape: f32[16,32], index: 0, kind: input, shape index: {}]
  %s1 = inlined_call_operand.vmem [shape: f32[32,4], index: 1, kind: input, shape index: {}]
  %s2 = inlined_call_operand.vmem [shape: f32[1,4], index: 2, kind: input, shape index: {}]
  %s3 = inlined_call_operand.vmem [shape: f32[4,32,64], index: 3, kind: input, shape index: {}]
  %s4 = inlined_call_operand.vmem [shape: f32[4,1,64], index: 4, kind: input, shape index: {}]
  %s5 = inlined_call_operand.vmem [shape: f32[4,64,32], index: 5, kind: input, shape index: {}]
  %s6 = inlined_call_operand.vmem [shape: f32[4,1,32], index: 6, kind: input, shape index: {}]
  %s7 = inlined_call_operand.hbm [shape: f32[16,32], index: 7, kind: output, shape index: {}]
  %s8 = sld [smem:[#allocation0]]
  $region73: #{tpu_custom_call.1} parent=0
    _
  %s10 = ssub.s32 1, %s8
  %s11 = scalar_select 0, %s10, %s8
  $region1: #{tpu_custom_call.1} parent=0
    #allocation6 [shape = 'u8[8192]{0}', space=vmem, size = 0x2000, scoped, tag = 'output window, operand 0, single buffered']
    #allocation7 [shape = 's32[2]{0}', space=sflag, size = 0x8, scoped, tag = 'scoped memory for tpu_custom_call.1']
    %12 = vsyncpa [#allocation7], 0
    loop: start=0, step=1, limit=6
    $region2: #{tpu_custom_call.1} parent=1 // loop_pre_header
      _
    $region3: #{tpu_custom_call.1} parent=1 // loop_header
      %s14 = sphi 0, %s18
      %p15 = scmp.ge.s32.totalorder %s14, 6
      %s21 = sphi 0, %s40
      %s22 = sphi 0, %s36
      %s23 = sphi 0, %s32
      %s24 = sphi 0, %s21
      %s25 = sphi 0, %s22
      %s26 = sphi 0, %s23
      %s27 = sphi 0, %s24
      %s28 = sphi 0, %s25
      %s29 = sphi 0, %s26
      %s43 = sphi 0, %s45
      %s46 = sphi 0, %s43
      %s47 = sphi 0, %s46
      %s63 = sphi 0, %s47
      %s67 = sphi 0, %s67
      %s69 = sphi 0, %s67
      %s70 = sphi 0, %s69
      %s84 = sphi 0, %s70
      %s88 = sphi 0, %s88
      %s90 = sphi 0, %s88
      %s91 = sphi 0, %s90
      %s105 = sphi 0, %s91
      %s113 = sphi 0, %s115
      %s116 = sphi 0, %s113
      %s117 = sphi 0, %s116
      %s133 = sphi 0, %s117
      %s141 = sphi 0, %s143
      %s144 = sphi 0, %s141
      %s145 = sphi 0, %s144
      %s161 = sphi 0, %s145
      %s169 = sphi 0, %s171
      %s172 = sphi 0, %s169
      %s173 = sphi 0, %s172
      %s189 = sphi 0, %s173
      %s195 = sphi 0, %s197
      %s198 = sphi 0, %s195
      %s199 = sphi 0, %s198
      %s215 = sphi 0, %s199
      %s221 = sphi 0, %s223
      %s224 = sphi 0, %s221
      %s225 = sphi 0, %s224
      %s241 = sphi 0, %s225
    $region4: #{tpu_custom_call.1} parent=1 // loop_header_branch
      %17 = sbr.rel (%p15) target = $region8
    $region5: #{tpu_custom_call.1} parent=1 // loop_body
      %s19 = ssub.s32 %s14, 1
      %s20 = ssub.s32 %s14, 2
      %s30 = sadd.s32 1, %s23
      %p31 = scmp.ge.s32.totalorder %s30, 1
      %s32 = scalar_select %p31, 0, %s30
      %s33 = sadd.s32 1, %s22
      %s34 = scalar_select %p31, %s33, %s22
      %p35 = scmp.ge.s32.totalorder %s34, 4
      %s36 = scalar_select %p35, 0, %s34
      %s37 = sadd.s32 1, %s21
      %s38 = scalar_select %p35, %s37, %s21
      %p39 = scmp.ge.s32.totalorder %s38, 1
      %s40 = scalar_select %p39, 0, %s38
      %s41 = ssub.s32 %s21, %s40
      %p42 = scmp.eq.s32.totalorder %s41, 0
      %s44 = sadd.s32 %s43, 1
      %s45 = scalar_select %p42, %s43, %s44
      %p48 = pneg %p42
      %p49 = scmp.eq.s32.totalorder %s14, 3
      %p50 = por %p48, %p49
      %p51 = scmp.ne.s32.totalorder %s43, %s46
      %p52 = scmp.eq.s32.totalorder %s14, 0
      %p53 = por %p51, %p52
      %p54 = scmp.ne.s32.totalorder %s43, %s46
      %p55 = scmp.eq.s32.totalorder %s19, 3
      %p56 = por %p54, %p55
      %p57 = scmp.ne.s32.totalorder %s46, %s47
      %p58 = scmp.eq.s32.totalorder %s19, 0
      %p59 = por %p57, %p58
      %p60 = scmp.ne.s32.totalorder %s46, %s47
      %p61 = scmp.eq.s32.totalorder %s20, 3
      %p62 = por %p60, %p61
      %p64 = scmp.ne.s32.totalorder %s47, %s63
      %p65 = scmp.eq.s32.totalorder %s20, 0
      %p66 = por %p64, %p65
      %s68 = sadd.s32 %s67, 1
      %p71 = scmp.eq.s32.totalorder %s14, 3
      %p72 = scmp.ne.s32.totalorder %s67, %s69
      %p73 = scmp.eq.s32.totalorder %s14, 0
      %p74 = por %p72, %p73
      %p75 = scmp.ne.s32.totalorder %s67, %s69
      %p76 = scmp.eq.s32.totalorder %s19, 3
      %p77 = por %p75, %p76
      %p78 = scmp.ne.s32.totalorder %s69, %s70
      %p79 = scmp.eq.s32.totalorder %s19, 0
      %p80 = por %p78, %p79
      %p81 = scmp.ne.s32.totalorder %s69, %s70
      %p82 = scmp.eq.s32.totalorder %s20, 3
      %p83 = por %p81, %p82
      %p85 = scmp.ne.s32.totalorder %s70, %s84
      %p86 = scmp.eq.s32.totalorder %s20, 0
      %p87 = por %p85, %p86
      %s89 = sadd.s32 %s88, 1
      %p92 = scmp.eq.s32.totalorder %s14, 3
      %p93 = scmp.ne.s32.totalorder %s88, %s90
      %p94 = scmp.eq.s32.totalorder %s14, 0
      %p95 = por %p93, %p94
      %p96 = scmp.ne.s32.totalorder %s88, %s90
      %p97 = scmp.eq.s32.totalorder %s19, 3
      %p98 = por %p96, %p97
      %p99 = scmp.ne.s32.totalorder %s90, %s91
      %p100 = scmp.eq.s32.totalorder %s19, 0
      %p101 = por %p99, %p100
      %p102 = scmp.ne.s32.totalorder %s90, %s91
      %p103 = scmp.eq.s32.totalorder %s20, 3
      %p104 = por %p102, %p103
      %p106 = scmp.ne.s32.totalorder %s91, %s105
      %p107 = scmp.eq.s32.totalorder %s20, 0
      %p108 = por %p106, %p107
      %s109 = ssub.s32 %s22, %s36
      %s110 = ssub.s32 %s23, %s32
      %s111 = sor.u32 %s109, %s110
      %p112 = scmp.eq.s32.totalorder %s111, 0
      %s114 = sadd.s32 %s113, 1
      %s115 = scalar_select %p112, %s113, %s114
      %p118 = pneg %p112
      %p119 = scmp.eq.s32.totalorder %s14, 3
      %p120 = por %p118, %p119
      %p121 = scmp.ne.s32.totalorder %s113, %s116
      %p122 = scmp.eq.s32.totalorder %s14, 0
      %p123 = por %p121, %p122
      %p124 = scmp.ne.s32.totalorder %s113, %s116
      %p125 = scmp.eq.s32.totalorder %s19, 3
      %p126 = por %p124, %p125
      %p127 = scmp.ne.s32.totalorder %s116, %s117
      %p128 = scmp.eq.s32.totalorder %s19, 0
      %p129 = por %p127, %p128
      %p130 = scmp.ne.s32.totalorder %s116, %s117
      %p131 = scmp.eq.s32.totalorder %s20, 3
      %p132 = por %p130, %p131
      %p134 = scmp.ne.s32.totalorder %s117, %s133
      %p135 = scmp.eq.s32.totalorder %s20, 0
      %p136 = por %p134, %p135
      %s137 = ssub.s32 %s22, %s36
      %s138 = ssub.s32 %s23, %s32
      %s139 = sor.u32 %s137, %s138
      %p140 = scmp.eq.s32.totalorder %s139, 0
      %s142 = sadd.s32 %s141, 1
      %s143 = scalar_select %p140, %s141, %s142
      %p146 = pneg %p140
      %p147 = scmp.eq.s32.totalorder %s14, 3
      %p148 = por %p146, %p147
      %p149 = scmp.ne.s32.totalorder %s141, %s144
      %p150 = scmp.eq.s32.totalorder %s14, 0
      %p151 = por %p149, %p150
      %p152 = scmp.ne.s32.totalorder %s141, %s144
      %p153 = scmp.eq.s32.totalorder %s19, 3
      %p154 = por %p152, %p153
      %p155 = scmp.ne.s32.totalorder %s144, %s145
      %p156 = scmp.eq.s32.totalorder %s19, 0
      %p157 = por %p155, %p156
      %p158 = scmp.ne.s32.totalorder %s144, %s145
      %p159 = scmp.eq.s32.totalorder %s20, 3
      %p160 = por %p158, %p159
      %p162 = scmp.ne.s32.totalorder %s145, %s161
      %p163 = scmp.eq.s32.totalorder %s20, 0
      %p164 = por %p162, %p163
      %s165 = ssub.s32 %s22, %s36
      %s166 = ssub.s32 %s23, %s32
      %s167 = sor.u32 %s165, %s166
      %p168 = scmp.eq.s32.totalorder %s167, 0
      %s170 = sadd.s32 %s169, 1
      %s171 = scalar_select %p168, %s169, %s170
      %p174 = pneg %p168
      %p175 = scmp.eq.s32.totalorder %s14, 3
      %p176 = por %p174, %p175
      %p177 = scmp.ne.s32.totalorder %s169, %s172
      %p178 = scmp.eq.s32.totalorder %s14, 0
      %p179 = por %p177, %p178
      %p180 = scmp.ne.s32.totalorder %s169, %s172
      %p181 = scmp.eq.s32.totalorder %s19, 3
      %p182 = por %p180, %p181
      %p183 = scmp.ne.s32.totalorder %s172, %s173
      %p184 = scmp.eq.s32.totalorder %s19, 0
      %p185 = por %p183, %p184
      %p186 = scmp.ne.s32.totalorder %s172, %s173
      %p187 = scmp.eq.s32.totalorder %s20, 3
      %p188 = por %p186, %p187
      %p190 = scmp.ne.s32.totalorder %s173, %s189
      %p191 = scmp.eq.s32.totalorder %s20, 0
      %p192 = por %p190, %p191
      %s193 = ssub.s32 %s22, %s36
      %p194 = scmp.eq.s32.totalorder %s193, 0
      %s196 = sadd.s32 %s195, 1
      %s197 = scalar_select %p194, %s195, %s196
      %p200 = pneg %p194
      %p201 = scmp.eq.s32.totalorder %s14, 3
      %p202 = por %p200, %p201
      %p203 = scmp.ne.s32.totalorder %s195, %s198
      %p204 = scmp.eq.s32.totalorder %s14, 0
      %p205 = por %p203, %p204
      %p206 = scmp.ne.s32.totalorder %s195, %s198
      %p207 = scmp.eq.s32.totalorder %s19, 3
      %p208 = por %p206, %p207
      %p209 = scmp.ne.s32.totalorder %s198, %s199
      %p210 = scmp.eq.s32.totalorder %s19, 0
      %p211 = por %p209, %p210
      %p212 = scmp.ne.s32.totalorder %s198, %s199
      %p213 = scmp.eq.s32.totalorder %s20, 3
      %p214 = por %p212, %p213
      %p216 = scmp.ne.s32.totalorder %s199, %s215
      %p217 = scmp.eq.s32.totalorder %s20, 0
      %p218 = por %p216, %p217
      %s219 = ssub.s32 %s21, %s40
      %p220 = scmp.eq.s32.totalorder %s219, 0
      %s222 = sadd.s32 %s221, 1
      %s223 = scalar_select %p220, %s221, %s222
      %p226 = pneg %p220
      %p227 = scmp.eq.s32.totalorder %s14, 3
      %p228 = por %p226, %p227
      %p229 = scmp.ne.s32.totalorder %s221, %s224
      %p230 = scmp.eq.s32.totalorder %s14, 0
      %p231 = por %p229, %p230
      %p232 = scmp.ne.s32.totalorder %s221, %s224
      %p233 = scmp.eq.s32.totalorder %s19, 3
      %p234 = por %p232, %p233
      %p235 = scmp.ne.s32.totalorder %s224, %s225
      %p236 = scmp.eq.s32.totalorder %s19, 0
      %p237 = por %p235, %p236
      %p238 = scmp.ne.s32.totalorder %s224, %s225
      %p239 = scmp.eq.s32.totalorder %s20, 3
      %p240 = por %p238, %p239
      %p242 = scmp.ne.s32.totalorder %s225, %s241
      %p243 = scmp.eq.s32.totalorder %s20, 0
      %p244 = por %p242, %p243
      %p245 = scmp.le.s32.totalorder 1, %s14
      %p246 = scmp.lt.s32.totalorder %s14, 5
      %p247 = pnand %p245, %p246
      %p248 = pneg %p247
      // Predicated region
      $region9: #{tpu_custom_call.1} parent=5 // pred_check
        _
      $region10: #{tpu_custom_call.1} parent=5 // pred_check_branch
        %250 = sbr.rel (%p247) target = $region12
      $region11: #{tpu_custom_call.1} parent=5 // pred_region
        %s251 = ssub.s32 %s14, 1
        // Predicated region
        $region13: #{tpu_custom_call.1} parent=11 // pred_check
          %p252 = pneg %p59
        $region14: #{tpu_custom_call.1} parent=11 // pred_check_branch
          %254 = sbr.rel (%p252) target = $region16
        $region15: #{tpu_custom_call.1} parent=11 // pred_region
          %s255 = smul.u32 2, %s24
          %p256 = scmp.lt.s32.totalorder %s255, 1
          %s257 = scalar_select %p256, %s255, 1
          %s258 = smul.addr %s257, 8
          %s259 = scalar_lea.vmem %s0, %s258
          %s260 = smul.u32 2, %s24
        $region16: #{tpu_custom_call.1} parent=11 // pred_fallthru
          _
        // Predicated region
        $region17: #{tpu_custom_call.1} parent=11 // pred_check
          %p261 = pneg %p80
        $region18: #{tpu_custom_call.1} parent=11 // pred_check_branch
          %263 = sbr.rel (%p261) target = $region20
        $region19: #{tpu_custom_call.1} parent=11 // pred_region
          _
        $region20: #{tpu_custom_call.1} parent=11 // pred_fallthru
          _
        // Predicated region
        $region21: #{tpu_custom_call.1} parent=11 // pred_check
          %p264 = pneg %p101
        $region22: #{tpu_custom_call.1} parent=11 // pred_check_branch
          %266 = sbr.rel (%p264) target = $region24
        $region23: #{tpu_custom_call.1} parent=11 // pred_region
          _
        $region24: #{tpu_custom_call.1} parent=11 // pred_fallthru
          _
      $region12: #{tpu_custom_call.1} parent=5 // pred_fallthru
        _
      %p267 = scmp.lt.s32.totalorder %s14, 4
      // Predicated region
      $region25: #{tpu_custom_call.1} parent=5 // pred_check
        %p268 = pneg %p267
      $region26: #{tpu_custom_call.1} parent=5 // pred_check_branch
        %270 = sbr.rel (%p268) target = $region28
      $region27: #{tpu_custom_call.1} parent=5 // pred_region
        // Predicated region
        $region29: #{tpu_custom_call.1} parent=27 // pred_check
          %p271 = pneg %p123
        $region30: #{tpu_custom_call.1} parent=27 // pred_check_branch
          %273 = sbr.rel (%p271) target = $region32
        $region31: #{tpu_custom_call.1} parent=27 // pred_region
          %p274 = scmp.lt.s32.totalorder %s22, 3
          %s275 = scalar_select %p274, %s22, 3
          %p276 = scmp.lt.s32.totalorder %s23, 0
          %s277 = scalar_select %p276, %s23, 0
          %s278 = smul.addr %s275, 4
          %s279 = sadd.s32 %s277, %s278
          %s280 = smul.addr %s279, 8
          %s281 = scalar_lea.vmem %s3, %s280
        $region32: #{tpu_custom_call.1} parent=27 // pred_fallthru
          _
        // Predicated region
        $region33: #{tpu_custom_call.1} parent=27 // pred_check
          %p282 = pneg %p151
        $region34: #{tpu_custom_call.1} parent=27 // pred_check_branch
          %284 = sbr.rel (%p282) target = $region36
        $region35: #{tpu_custom_call.1} parent=27 // pred_region
          %p285 = scmp.lt.s32.totalorder %s22, 3
          %s286 = scalar_select %p285, %s22, 3
          %p287 = scmp.lt.s32.totalorder %s23, 0
          %s288 = scalar_select %p287, %s23, 0
          %s289 = sadd.s32 %s288, %s286
          %s290 = scalar_lea.vmem %s4, %s289
        $region36: #{tpu_custom_call.1} parent=27 // pred_fallthru
          _
        // Predicated region
        $region37: #{tpu_custom_call.1} parent=27 // pred_check
          %p291 = pneg %p179
        $region38: #{tpu_custom_call.1} parent=27 // pred_check_branch
          %293 = sbr.rel (%p291) target = $region40
        $region39: #{tpu_custom_call.1} parent=27 // pred_region
          %s294 = smul.u32 8, %s23
          %p295 = scmp.lt.s32.totalorder %s22, 3
          %s296 = scalar_select %p295, %s22, 3
          %p297 = scmp.lt.s32.totalorder %s294, 7
          %s298 = scalar_select %p297, %s294, 7
          %s299 = smul.addr %s296, 8
          %s300 = sadd.s32 %s298, %s299
          %s301 = smul.addr %s300, 8
          %s302 = scalar_lea.vmem %s5, %s301
          %s303 = smul.u32 8, %s23
        $region40: #{tpu_custom_call.1} parent=27 // pred_fallthru
          _
        // Predicated region
        $region41: #{tpu_custom_call.1} parent=27 // pred_check
          %p304 = pneg %p205
        $region42: #{tpu_custom_call.1} parent=27 // pred_check_branch
          %306 = sbr.rel (%p304) target = $region44
        $region43: #{tpu_custom_call.1} parent=27 // pred_region
          %p307 = scmp.lt.s32.totalorder %s22, 3
          %s308 = scalar_select %p307, %s22, 3
          %s309 = scalar_lea.vmem %s6, %s308
        $region44: #{tpu_custom_call.1} parent=27 // pred_fallthru
          _
      $region28: #{tpu_custom_call.1} parent=5 // pred_fallthru
        _
      %p310 = scmp.le.s32.totalorder 1, %s14
      %p311 = scmp.lt.s32.totalorder %s14, 5
      %p312 = pnand %p310, %p311
      %p313 = pneg %p312
      // Predicated region
      $region45: #{tpu_custom_call.1} parent=5 // pred_check
        _
      $region46: #{tpu_custom_call.1} parent=5 // pred_check_branch
        %315 = sbr.rel (%p312) target = $region48
      $region47: #{tpu_custom_call.1} parent=5 // pred_region
        %s316 = ssub.s32 %s14, 1
        %s317 = smul.u32 2, %s24
        %p318 = scmp.lt.s32.totalorder %s317, 1
        %s319 = scalar_select %p318, %s317, 1
        %s320 = smul.addr %s319, 8
        %s321 = scalar_lea.vmem %s0, %s320
        %p322 = pneg %p59
        %p323 = pneg %p56
        %p324 = pneg %p80
        %p325 = pneg %p77
        %p326 = pneg %p101
        %p327 = pneg %p98
        %p328 = scmp.lt.s32.totalorder %s25, 3
        %s329 = scalar_select %p328, %s25, 3
        %p330 = scmp.lt.s32.totalorder %s26, 0
        %s331 = scalar_select %p330, %s26, 0
        %s332 = smul.addr %s329, 4
        %s333 = sadd.s32 %s331, %s332
        %s334 = smul.addr %s333, 8
        %s335 = scalar_lea.vmem %s3, %s334
        %p336 = pneg %p129
        %p337 = pneg %p126
        %p338 = scmp.lt.s32.totalorder %s25, 3
        %s339 = scalar_select %p338, %s25, 3
        %p340 = scmp.lt.s32.totalorder %s26, 0
        %s341 = scalar_select %p340, %s26, 0
        %s342 = sadd.s32 %s341, %s339
        %s343 = scalar_lea.vmem %s4, %s342
        %p344 = pneg %p157
        %p345 = pneg %p154
        %s346 = smul.u32 8, %s26
        %p347 = scmp.lt.s32.totalorder %s25, 3
        %s348 = scalar_select %p347, %s25, 3
        %p349 = scmp.lt.s32.totalorder %s346, 7
        %s350 = scalar_select %p349, %s346, 7
        %s351 = smul.addr %s348, 8
        %s352 = sadd.s32 %s350, %s351
        %s353 = smul.addr %s352, 8
        %s354 = scalar_lea.vmem %s5, %s353
        %p355 = pneg %p185
        %p356 = pneg %p182
        %p357 = scmp.lt.s32.totalorder %s25, 3
        %s358 = scalar_select %p357, %s25, 3
        %s359 = scalar_lea.vmem %s6, %s358
        %p360 = pneg %p211
        %p361 = pneg %p208
        %p362 = pneg %p237
        %p363 = pneg %p234
        %s364 = smul.u32 2, %s24
        %p365 = scmp.lt.s32.totalorder %s364, 1
        %s366 = scalar_select %p365, %s364, 1
        %s367 = smul.addr %s366, 8
        %s368 = scalar_lea.vmem %s0, %s367
        %s369 = smul.u32 2, %s24
        %p370 = scmp.lt.s32.totalorder %s25, 3
        %s371 = scalar_select %p370, %s25, 3
        %p372 = scmp.lt.s32.totalorder %s26, 0
        %s373 = scalar_select %p372, %s26, 0
        %s374 = smul.addr %s371, 4
        %s375 = sadd.s32 %s373, %s374
        %s376 = smul.addr %s375, 8
        %s377 = scalar_lea.vmem %s3, %s376
        %p378 = scmp.lt.s32.totalorder %s25, 3
        %s379 = scalar_select %p378, %s25, 3
        %p380 = scmp.lt.s32.totalorder %s26, 0
        %s381 = scalar_select %p380, %s26, 0
        %s382 = sadd.s32 %s381, %s379
        %s383 = scalar_lea.vmem %s4, %s382
        %s384 = smul.u32 8, %s26
        %p385 = scmp.lt.s32.totalorder %s25, 3
        %s386 = scalar_select %p385, %s25, 3
        %p387 = scmp.lt.s32.totalorder %s384, 7
        %s388 = scalar_select %p387, %s384, 7
        %s389 = smul.addr %s386, 8
        %s390 = sadd.s32 %s388, %s389
        %s391 = smul.addr %s390, 8
        %s392 = scalar_lea.vmem %s5, %s391
        %s393 = smul.u32 8, %s26
        %p394 = scmp.lt.s32.totalorder %s25, 3
        %s395 = scalar_select %p394, %s25, 3
        %s396 = scalar_lea.vmem %s6, %s395
        %s397 = smul.u32 2, %s24
        %p398 = scmp.eq.s32.totalorder %s25, 0
        %p399 = scmp.eq.s32.totalorder %s26, 0
        %p400 = pnand %p398, %p399
        %p401 = pneg %p400
        // Predicated region
        $region49: #{tpu_custom_call.1} parent=47 // pred_check
          _
        $region50: #{tpu_custom_call.1} parent=47 // pred_check_branch
          %403 = sbr.rel (%p400) target = $region52
        $region51: #{tpu_custom_call.1} parent=47 // pred_region
          %v404 = vld [vmem:[%s368] sm:$0xff]
          %v405 = vld [vmem:[%s368 + $0x8] sm:$0xff]
          %vm406 = vcmask 261120
          %407 = vst.msk [vmem:[#allocation4] sm:$0xff] %vm406, %v404
          %408 = vst.msk [vmem:[#allocation4 + $0x8] sm:$0xff] %vm406, %v405
          %v409 = vld [vmem:[%s1] sm:$0xff]
          %v410 = vld [vmem:[%s1 + $0x8] sm:$0xff]
          %v411 = vld [vmem:[%s1 + $0x10] sm:$0xff]
          %v412 = vld [vmem:[%s1 + $0x18] sm:$0xff]
          %v413 = vld [vmem:[%s2] sm:$0x1]
          %v415 = vlaneseq
          %v416 = vshrl.u32 %v415, 7
          %v417 = vsub.s32 0, %v416
          %v418 = vrot.slane %v413, %v417
          %v421 = vsel %vm406, %v404, 0
          %v424 = vsel %vm406, %v405, 0
          %426 = vmatprep.subr.mxu0 0.0
          %427 = vmatpush1.msra.mxu0 %v409
          %428 = vmatprep.subr.mxu0 0.0
          %429 = vmatpush1.msra.mxu0 %v410
          %430 = vmatprep.subr.mxu0 0.0
          %431 = vmatpush1.msra.mxu0 %v411
          %432 = vmatprep.subr.mxu0 0.0
          %433 = vmatpush1.msra.mxu0 %v412
          %434 = vmatprep.subr.mxu0 0.0
          %435 = vmatpush1.msra.mxu0 0.0
          %436 = vmatprep.subr.mxu0 0.0
          %437 = vmatpush1.msra.mxu0 0.0
          %438 = vmatprep.subr.mxu0 0.0
          %439 = vmatpush1.msra.mxu0 0.0
          %440 = vmatprep.subr.mxu0 0.0
          %441 = vmatpush1.msra.mxu0 0.0
          %442 = vmatprep.subr.mxu0 0.0
          %443 = vmatpush1.msra.mxu0 0.0
          %444 = vmatprep.subr.mxu0 0.0
          %445 = vmatpush1.msra.mxu0 0.0
          %446 = vmatprep.subr.mxu0 0.0
          %447 = vmatpush1.msra.mxu0 0.0
          %448 = vmatprep.subr.mxu0 0.0
          %449 = vmatpush1.msra.mxu0 0.0
          %450 = vmatprep.subr.mxu0 0.0
          %451 = vmatpush1.msra.mxu0 0.0
          %452 = vmatprep.subr.mxu0 0.0
          %453 = vmatpush1.msra.mxu0 0.0
          %454 = vmatprep.subr.mxu0 0.0
          %455 = vmatpush1.msra.mxu0 0.0
          %456 = vmatprep.subr.mxu0 0.0
          %457 = vmatpush1.msra.mxu0 0.0
          %458 = vmatprep.subr.mxu0 0.0
          %459 = vmatpush1.msra.mxu0 0.0
          %460 = vmatprep.subr.mxu0 0.0
          %461 = vmatpush1.msra.mxu0 0.0
          %462 = vmatprep.subr.mxu0 0.0
          %463 = vmatpush1.msra.mxu0 0.0
          %464 = vmatprep.subr.mxu0 0.0
          %465 = vmatpush1.msra.mxu0 0.0
          %466 = vmatprep.subr.mxu0 0.0
          %467 = vmatpush1.msra.mxu0 0.0
          %468 = vmatprep.subr.mxu0 0.0
          %469 = vmatpush1.msra.mxu0 0.0
          %470 = vmatprep.subr.mxu0 0.0
          %471 = vmatpush1.msra.mxu0 0.0
          %472 = vmatprep.subr.mxu0 0.0
          %473 = vmatpush1.msra.mxu0 0.0
          %474 = vmatprep.subr.mxu0 0.0
          %475 = vmatpush1.msra.mxu0 0.0
          %476 = vmatprep.subr.mxu0 0.0
          %477 = vmatpush1.msra.mxu0 0.0
          %478 = vmatprep.subr.mxu0 0.0
          %479 = vmatpush1.msra.mxu0 0.0
          %480 = vmatprep.subr.mxu0 0.0
          %481 = vmatpush1.msra.mxu0 0.0
          %482 = vmatprep.subr.mxu0 0.0
          %483 = vmatpush1.msra.mxu0 0.0
          %484 = vmatprep.subr.mxu0 0.0
          %485 = vmatpush1.msra.mxu0 0.0
          %486 = vmatprep.subr.mxu0 0.0
          %487 = vmatpush1.msra.mxu0 0.0
          %488 = vmatprep.subr.mxu0 0.0
          %489 = vmatpush1.msra.mxu0 0.0
          %490 = vmatprep.mubr.f32.mxu0 0.0
          %491 = vmatmul.mubr.f32.gmra.mrb[0].mxu0 %v421
          %v492 = vpop.f32.mrb[0].mxu0
          %v493 = vadd.f32 %v418, %v492
          %v494 = vpop.f32.mrb[0].mxu0
          %495 = vmatprep.mubr.f32.mxu0 0.0
          %496 = vmatmul.mubr.f32.gmra.mrb[0].mxu0 %v424
          %v497 = vpop.f32.mrb[0].mxu0
          %v498 = vadd.f32 %v418, %v497
          %v499 = vpop.f32.mrb[0].mxu0
          %500 = vdwg.mxu0
          %vm501 = vcmask 31744
          %v502 = vsel %vm501, %v493, -inf
          %503 = vmax.xlane.f32.xlu0 %v502
          %v504 = vpop.xlane.xlu0 %503
          %v505 = vsel %vm501, %v498, -inf
          %506 = vmax.xlane.f32.xlu0 %v505
          %v507 = vpop.xlane.xlu0 %506
          %v508 = vsub.f32 %v493, %v504
          %v509 = vsub.f32 %v498, %v507
          %v510 = vmul.f32 %v508, 1.442695
          %v511 = vpow.pop %v510
          %v512 = vmul.f32 %v509, 1.442695
          %v513 = vpow.pop %v512
          %v514 = vsel %vm501, %v511, 0.0
          %515 = vadd.xlane.f32.xlu0 %v514
          %v516 = vpop.xlane.xlu0 %515
          %v517 = vsel %vm501, %v513, 0.0
          %518 = vadd.xlane.f32.xlu0 %v517
          %v519 = vpop.xlane.xlu0 %518
          %v520 = vrcp.pop %v516
          %v521 = vrcp.pop %v519
          %v522 = vmul.f32 %v511, %v520
          %v523 = vmul.f32 %v513, %v521
          %524 = vst.msk [vmem:[#allocation3] sm:$0xff] %vm501, %v522
          %525 = vst.msk [vmem:[#allocation3 + $0x8] sm:$0xff] %vm501, %v523
          %526 = vst.msk [vmem:[#allocation2] sm:$0xff] %vm406, 0.0
          %527 = vst.msk [vmem:[#allocation2 + $0x8] sm:$0xff] %vm406, 0.0
        $region52: #{tpu_custom_call.1} parent=47 // pred_fallthru
          _
        // Predicated region
        $region53: #{tpu_custom_call.1} parent=47 // pred_check
          %p528 = pneg %p399
        $region54: #{tpu_custom_call.1} parent=47 // pred_check_branch
          %530 = sbr.rel (%p528) target = $region56
        $region55: #{tpu_custom_call.1} parent=47 // pred_region
          %v531 = vld [vmem:[#allocation3] sm:$0xff]
          %v532 = vld [vmem:[#allocation3 + $0x8] sm:$0xff]
          %v533 = vlaneseq
          %v534 = vand.u32 %v533, 127
          %v535 = vstv %s25
          %vm536 = vcmp.eq.s32.totalorder %v534, %v535
          %v537 = vsel %vm536, %v531, 0.0
          %v538 = vsel %vm536, %v532, 0.0
          %vm539 = vcmask 31744
          %v540 = vsel %vm539, %v537, 0.0
          %541 = vadd.xlane.f32.xlu0 %v540
          %v542 = vpop.xlane.xlu0 %541
          %v543 = vsel %vm539, %v538, 0.0
          %544 = vadd.xlane.f32.xlu0 %v543
          %v545 = vpop.xlane.xlu0 %544
          %vm546 = vcmask 7168
          %547 = vst.msk [vmem:[#allocation5] sm:$0xff] %vm546, %v542
          %548 = vst.msk [vmem:[#allocation5 + $0x8] sm:$0xff] %vm546, %v545
          %v549 = vld [vmem:[#allocation2] sm:$0xff]
          %v550 = vld [vmem:[#allocation2 + $0x8] sm:$0xff]
          %v551 = vld [vmem:[#allocation5] sm:$0xff]
          %v552 = vld [vmem:[#allocation5 + $0x8] sm:$0xff]
          %v553 = vld [vmem:[%s396] sm:$0x1]
          %555 = vset.pattern.permute.xlu0 0
          %556 = vperm.xlu0 %555, %v551
          %v557 = vpop.permute.xlu0 %556
          %560 = vset.pattern.permute.xlu0 0
          %561 = vperm.xlu0 %560, %v552
          %v562 = vpop.permute.xlu0 %561
          %v565 = vlaneseq
          %v566 = vshrl.u32 %v565, 7
          %v567 = vsub.s32 0, %v566
          %v568 = vrot.slane %v553, %v567
          %v570 = vmul.f32 %v557, %v568
          %v571 = vmul.f32 %v562, %v568
          %v572 = vadd.f32 %v549, %v570
          %v573 = vadd.f32 %v550, %v571
          %vm574 = vcmask 261120
          %575 = vst.msk [vmem:[#allocation2] sm:$0xff] %vm574, %v572
          %576 = vst.msk [vmem:[#allocation2 + $0x8] sm:$0xff] %vm574, %v573
        $region56: #{tpu_custom_call.1} parent=47 // pred_fallthru
          _
        %v577 = vld [vmem:[#allocation5] sm:$0xff]
        %v578 = vld [vmem:[#allocation5 + $0x8] sm:$0xff]
        %v579 = vld [vmem:[#allocation4] sm:$0xff]
        %v580 = vld [vmem:[#allocation4 + $0x8] sm:$0xff]
        %v581 = vld [vmem:[%s377] sm:$0xff]
        %v582 = vld [vmem:[%s377 + $0x8] sm:$0xff]
        %v583 = vld [vmem:[%s377 + $0x10] sm:$0xff]
        %v584 = vld [vmem:[%s377 + $0x18] sm:$0xff]
        %v585 = vld [vmem:[%s383] sm:$0x1]
        %v587 = vlaneseq
        %v588 = vshrl.u32 %v587, 7
        %v589 = vsub.s32 0, %v588
        %v590 = vrot.slane %v585, %v589
        %vm592 = vcmask 261120
        %v594 = vsel %vm592, %v579, 0
        %v597 = vsel %vm592, %v580, 0
        %599 = vmatprep.subr.mxu0 0.0
        %600 = vmatpush1.msra.mxu0 %v581
        %601 = vmatprep.subr.mxu0 0.0
        %602 = vmatpush1.msra.mxu0 %v582
        %603 = vmatprep.subr.mxu0 0.0
        %604 = vmatpush1.msra.mxu0 %v583
        %605 = vmatprep.subr.mxu0 0.0
        %606 = vmatpush1.msra.mxu0 %v584
        %607 = vmatprep.subr.mxu0 0.0
        %608 = vmatpush1.msra.mxu0 0.0
        %609 = vmatprep.subr.mxu0 0.0
        %610 = vmatpush1.msra.mxu0 0.0
        %611 = vmatprep.subr.mxu0 0.0
        %612 = vmatpush1.msra.mxu0 0.0
        %613 = vmatprep.subr.mxu0 0.0
        %614 = vmatpush1.msra.mxu0 0.0
        %615 = vmatprep.subr.mxu0 0.0
        %616 = vmatpush1.msra.mxu0 0.0
        %617 = vmatprep.subr.mxu0 0.0
        %618 = vmatpush1.msra.mxu0 0.0
        %619 = vmatprep.subr.mxu0 0.0
        %620 = vmatpush1.msra.mxu0 0.0
        %621 = vmatprep.subr.mxu0 0.0
        %622 = vmatpush1.msra.mxu0 0.0
        %623 = vmatprep.subr.mxu0 0.0
        %624 = vmatpush1.msra.mxu0 0.0
        %625 = vmatprep.subr.mxu0 0.0
        %626 = vmatpush1.msra.mxu0 0.0
        %627 = vmatprep.subr.mxu0 0.0
        %628 = vmatpush1.msra.mxu0 0.0
        %629 = vmatprep.subr.mxu0 0.0
        %630 = vmatpush1.msra.mxu0 0.0
        %631 = vmatprep.subr.mxu0 0.0
        %632 = vmatpush1.msra.mxu0 0.0
        %633 = vmatprep.subr.mxu0 0.0
        %634 = vmatpush1.msra.mxu0 0.0
        %635 = vmatprep.subr.mxu0 0.0
        %636 = vmatpush1.msra.mxu0 0.0
        %637 = vmatprep.subr.mxu0 0.0
        %638 = vmatpush1.msra.mxu0 0.0
        %639 = vmatprep.subr.mxu0 0.0
        %640 = vmatpush1.msra.mxu0 0.0
        %641 = vmatprep.subr.mxu0 0.0
        %642 = vmatpush1.msra.mxu0 0.0
        %643 = vmatprep.subr.mxu0 0.0
        %644 = vmatpush1.msra.mxu0 0.0
        %645 = vmatprep.subr.mxu0 0.0
        %646 = vmatpush1.msra.mxu0 0.0
        %647 = vmatprep.subr.mxu0 0.0
        %648 = vmatpush1.msra.mxu0 0.0
        %649 = vmatprep.subr.mxu0 0.0
        %650 = vmatpush1.msra.mxu0 0.0
        %651 = vmatprep.subr.mxu0 0.0
        %652 = vmatpush1.msra.mxu0 0.0
        %653 = vmatprep.subr.mxu0 0.0
        %654 = vmatpush1.msra.mxu0 0.0
        %655 = vmatprep.subr.mxu0 0.0
        %656 = vmatpush1.msra.mxu0 0.0
        %657 = vmatprep.subr.mxu0 0.0
        %658 = vmatpush1.msra.mxu0 0.0
        %659 = vmatprep.subr.mxu0 0.0
        %660 = vmatpush1.msra.mxu0 0.0
        %661 = vmatprep.subr.mxu0 0.0
        %662 = vmatpush1.msra.mxu0 0.0
        %663 = vmatprep.mubr.f32.mxu0 0.0
        %664 = vmatmul.mubr.f32.gmra.mrb[0].mxu0 %v594
        %v665 = vpop.f32.mrb[0].mxu0
        %v666 = vadd.f32 %v590, %v665
        %v667 = vpop.f32.mrb[0].mxu0
        %668 = vmatprep.mubr.f32.mxu0 0.0
        %669 = vmatmul.mubr.f32.gmra.mrb[0].mxu0 %v597
        %v670 = vpop.f32.mrb[0].mxu0
        %v671 = vadd.f32 %v590, %v670
        %v672 = vpop.f32.mrb[0].mxu0
        %673 = vdwg.mxu0
        %v674 = vmax.f32 %v666, 0.0
        %v675 = vmax.f32 %v671, 0.0
        %677 = vset.pattern.permute.xlu0 0
        %678 = vperm.xlu0 %677, %v577
        %v679 = vpop.permute.xlu0 %678
        %682 = vset.pattern.permute.xlu0 0
        %683 = vperm.xlu0 %682, %v578
        %v684 = vpop.permute.xlu0 %683
        %v686 = vmul.f32 %v679, %v674
        %v687 = vmul.f32 %v684, %v675
        %v688 = vld [vmem:[#allocation2] sm:$0xff]
        %v689 = vld [vmem:[#allocation2 + $0x8] sm:$0xff]
        %v690 = vld [vmem:[%s392] sm:$0xff]
        %v691 = vld [vmem:[%s392 + $0x8] sm:$0xff]
        %v692 = vld [vmem:[%s392 + $0x10] sm:$0xff]
        %v693 = vld [vmem:[%s392 + $0x18] sm:$0xff]
        %v694 = vld [vmem:[%s392 + $0x20] sm:$0xff]
        %v695 = vld [vmem:[%s392 + $0x28] sm:$0xff]
        %v696 = vld [vmem:[%s392 + $0x30] sm:$0xff]
        %v697 = vld [vmem:[%s392 + $0x38] sm:$0xff]
        %vm698 = vcmask 523264
        %v700 = vsel %vm698, %v686, 0
        %v703 = vsel %vm698, %v687, 0
        %705 = vmatprep.subr.mxu0 0.0
        %706 = vmatpush1.msra.mxu0 %v690
        %707 = vmatprep.subr.mxu0 0.0
        %708 = vmatpush1.msra.mxu0 %v691
        %709 = vmatprep.subr.mxu0 0.0
        %710 = vmatpush1.msra.mxu0 %v692
        %711 = vmatprep.subr.mxu0 0.0
        %712 = vmatpush1.msra.mxu0 %v693
        %713 = vmatprep.subr.mxu0 0.0
        %714 = vmatpush1.msra.mxu0 %v694
        %715 = vmatprep.subr.mxu0 0.0
        %716 = vmatpush1.msra.mxu0 %v695
        %717 = vmatprep.subr.mxu0 0.0
        %718 = vmatpush1.msra.mxu0 %v696
        %719 = vmatprep.subr.mxu0 0.0
        %720 = vmatpush1.msra.mxu0 %v697
        %721 = vmatprep.subr.mxu0 0.0
        %722 = vmatpush1.msra.mxu0 0.0
        %723 = vmatprep.subr.mxu0 0.0
        %724 = vmatpush1.msra.mxu0 0.0
        %725 = vmatprep.subr.mxu0 0.0
        %726 = vmatpush1.msra.mxu0 0.0
        %727 = vmatprep.subr.mxu0 0.0
        %728 = vmatpush1.msra.mxu0 0.0
        %729 = vmatprep.subr.mxu0 0.0
        %730 = vmatpush1.msra.mxu0 0.0
        %731 = vmatprep.subr.mxu0 0.0
        %732 = vmatpush1.msra.mxu0 0.0
        %733 = vmatprep.subr.mxu0 0.0
        %734 = vmatpush1.msra.mxu0 0.0
        %735 = vmatprep.subr.mxu0 0.0
        %736 = vmatpush1.msra.mxu0 0.0
        %737 = vmatprep.subr.mxu0 0.0
        %738 = vmatpush1.msra.mxu0 0.0
        %739 = vmatprep.subr.mxu0 0.0
        %740 = vmatpush1.msra.mxu0 0.0
        %741 = vmatprep.subr.mxu0 0.0
        %742 = vmatpush1.msra.mxu0 0.0
        %743 = vmatprep.subr.mxu0 0.0
        %744 = vmatpush1.msra.mxu0 0.0
        %745 = vmatprep.subr.mxu0 0.0
        %746 = vmatpush1.msra.mxu0 0.0
        %747 = vmatprep.subr.mxu0 0.0
        %748 = vmatpush1.msra.mxu0 0.0
        %749 = vmatprep.subr.mxu0 0.0
        %750 = vmatpush1.msra.mxu0 0.0
        %751 = vmatprep.subr.mxu0 0.0
        %752 = vmatpush1.msra.mxu0 0.0
        %753 = vmatprep.subr.mxu0 0.0
        %754 = vmatpush1.msra.mxu0 0.0
        %755 = vmatprep.subr.mxu0 0.0
        %756 = vmatpush1.msra.mxu0 0.0
        %757 = vmatprep.subr.mxu0 0.0
        %758 = vmatpush1.msra.mxu0 0.0
        %759 = vmatprep.subr.mxu0 0.0
        %760 = vmatpush1.msra.mxu0 0.0
        %761 = vmatprep.subr.mxu0 0.0
        %762 = vmatpush1.msra.mxu0 0.0
        %763 = vmatprep.subr.mxu0 0.0
        %764 = vmatpush1.msra.mxu0 0.0
        %765 = vmatprep.subr.mxu0 0.0
        %766 = vmatpush1.msra.mxu0 0.0
        %767 = vmatprep.subr.mxu0 0.0
        %768 = vmatpush1.msra.mxu0 0.0
        %769 = vmatprep.mubr.f32.mxu0 0.0
        %770 = vmatmul.mubr.f32.gmra.mrb[0].mxu0 %v700
        %v771 = vpop.f32.mrb[0].mxu0
        %v772 = vadd.f32 0.0, %v771
        %v773 = vpop.f32.mrb[0].mxu0
        %774 = vmatprep.mubr.f32.mxu0 0.0
        %775 = vmatmul.mubr.f32.gmra.mrb[0].mxu0 %v703
        %v776 = vpop.f32.mrb[0].mxu0
        %v777 = vadd.f32 0.0, %v776
        %v778 = vpop.f32.mrb[0].mxu0
        %779 = vdwg.mxu0
        %v780 = vadd.f32 %v688, %v772
        %v781 = vadd.f32 %v689, %v777
        %782 = vst.msk [vmem:[#allocation2] sm:$0xff] %vm592, %v780
        %783 = vst.msk [vmem:[#allocation2 + $0x8] sm:$0xff] %vm592, %v781
        %p784 = scmp.eq.s32.totalorder %s25, 3
        %p785 = pnand %p784, %p399
        %p786 = pneg %p785
        // Predicated region
        $region57: #{tpu_custom_call.1} parent=47 // pred_check
          _
        $region58: #{tpu_custom_call.1} parent=47 // pred_check_branch
          %788 = sbr.rel (%p785) target = $region60
        $region59: #{tpu_custom_call.1} parent=47 // pred_region
          %v789 = vld [vmem:[#allocation2] sm:$0xff]
          %v790 = vld [vmem:[#allocation2 + $0x8] sm:$0xff]
          %791 = vst.msk [vmem:[#allocation6] sm:$0xff] %vm592, %v789
          %792 = vst.msk [vmem:[#allocation6 + $0x8] sm:$0xff] %vm592, %v790
        $region60: #{tpu_custom_call.1} parent=47 // pred_fallthru
          _
        // Predicated region
        $region61: #{tpu_custom_call.1} parent=47 // pred_check
          %p793 = pneg %p234
        $region62: #{tpu_custom_call.1} parent=47 // pred_check_branch
          %795 = sbr.rel (%p793) target = $region64
        $region63: #{tpu_custom_call.1} parent=47 // pred_region
          %s796 = smul.u32 2, %s24
          %s798 = ssub.s32 256, 256
          %799 = vsyncadd [#allocation7], %s798
          %s800 = smul.addr %s796, 128
          %s801 = scalar_lea.hbm %s7, %s800
          %s802 = sshll.u32 [#allocation6], 4
          %s803 = int_to_ptr.vmem [resolvable:$true] %s802
          %808 = dma.vmem_to_hbm [thread:$0]  %s803, 256, %s801, [#allocation7], 128, 128, 8
        $region64: #{tpu_custom_call.1} parent=47 // pred_fallthru
          _
        // Predicated region
        $region65: #{tpu_custom_call.1} parent=47 // pred_check
          %p809 = pneg %p234
        $region66: #{tpu_custom_call.1} parent=47 // pred_check_branch
          %811 = sbr.rel (%p809) target = $region68
        $region67: #{tpu_custom_call.1} parent=47 // pred_region
          %812 = dma.done [#allocation7], 256
        $region68: #{tpu_custom_call.1} parent=47 // pred_fallthru
          _
      $region48: #{tpu_custom_call.1} parent=5 // pred_fallthru
        _
      %p813 = scmp.le.s32.totalorder 2, %s14
      // Predicated region
      $region69: #{tpu_custom_call.1} parent=5 // pred_check
        %p814 = pneg %p813
      $region70: #{tpu_custom_call.1} parent=5 // pred_check_branch
        %816 = sbr.rel (%p814) target = $region72
      $region71: #{tpu_custom_call.1} parent=5 // pred_region
        %s817 = ssub.s32 %s14, 2
      $region72: #{tpu_custom_call.1} parent=5 // pred_fallthru
        _
    $region6: #{tpu_custom_call.1} parent=1 // loop_footer
      %s18 = sadd.s32 1, %s14
    $region7: #{tpu_custom_call.1} parent=1 // loop_footer_branch
      %13 = sbr.rel target = $region3
    $region8: #{tpu_custom_call.1} parent=1 // loop_exit
      _
    %818 = vsyncpa [#allocation7], 1
    %s819 = scalar_lea.sflag [#allocation7], 1
    %820 = vsyncpa %s819, 1

</llo_original>
